<compile_context>
chip_gen: v7x
topology: tpu7x:2x2x1
jax: 0.10.0
libtpu: 0.0.40
codegen_flags: <defaults>
</compile_context>

<pallas_src>
import functools
from typing import NamedTuple, Optional

import jax
import jax.numpy as jnp
from jax.experimental import pallas as pl
from jax.experimental.pallas import tpu as pltpu


def _round_up(a: int, b: int) -> int:
    return (a + b - 1) // b * b


def _chip_generation() -> str:
    try:
        kind = jax.devices()[0].device_kind.lower()
    except Exception:
        return "unknown"
    if "v5" in kind:
        return "v5e"
    if "v6" in kind:
        return "v6e"
    if "v7" in kind or "7x" in kind:
        return "v7x"
    return "unknown"


def _vmem_capacity_bytes() -> int:
    try:
        return int(pltpu.get_tpu_info().vmem_capacity_bytes)
    except Exception:
        # Conservative fallback: v7x has 64 MiB / TensorCore, older chips 128 MiB.
        return (64 << 20) if _chip_generation() == "v7x" else (128 << 20)


# (tm, ts) defaults per generation, from the weight-streaming roofline.
_DEFAULT_TILES = {
    "v5e": (256, 512),
    "v6e": (1024, 512),
    "v7x": (640, 256),
    "unknown": (512, 512),
}


class PackedLlamaMLPWeights(NamedTuple):
    w_gu: jax.Array    # (H, n_j * 2 * ts): split tile j is [gate_tile_j | up_tile_j]
    w_down: jax.Array  # (split_pad, H), zero-padded rows beyond true split_dim
    ts: int            # split tile width the packing was built for
    split: int         # true (unpadded) split_dim, for cost estimates


def pack_llama_mlp_weights(w_gate, w_up, w_down, *, ts: Optional[int] = None
                           ) -> PackedLlamaMLPWeights:
    """One-time (load-time) weight packing.  Do NOT call per forward pass.

    w_gate / w_up: (H, split_dim)   [nn.Linear weight transposed]
    w_down:        (split_dim, H)
    """
    H, split = w_gate.shape
    if ts is None:
        ts = _DEFAULT_TILES.get(_chip_generation(), _DEFAULT_TILES["unknown"])[1]
    ts = max(128, min(ts, _round_up(split, 128)))
    ts = _round_up(ts, 128)
    split_pad = _round_up(split, ts)
    n_j = split_pad // ts

    pad = split_pad - split
    wg = jnp.pad(w_gate, ((0, 0), (0, pad))) if pad else w_gate
    wu = jnp.pad(w_up, ((0, 0), (0, pad))) if pad else w_up
    wd = jnp.pad(w_down, ((0, pad), (0, 0))) if pad else w_down

    # Column block j of w_gu is [gate_tile_j | up_tile_j] so the kernel runs a
    # single (tm, H) x (H, 2*ts) MXU pass per split tile and slices g/u out.
    w_gu = jnp.stack([wg.reshape(H, n_j, ts), wu.reshape(H, n_j, ts)], axis=2)
    w_gu = w_gu.reshape(H, n_j * 2 * ts)
    return PackedLlamaMLPWeights(w_gu=w_gu, w_down=wd, ts=ts, split=split)


def _mlp_kernel(x_ref, wgu_ref, wd_ref, o_ref, acc_ref, *, ts: int):
    j = pl.program_id(1)  # split_dim (reduction) axis, innermost

    @pl.when(j == 0)
    def _():
        acc_ref[...] = jnp.zeros_like(acc_ref)

    x = x_ref[...]
    # Fused gate+up projection: one MXU pass over the (H, 2*ts) weight tile.
    gu = jnp.dot(x, wgu_ref[...], preferred_element_type=jnp.float32)
    g = gu[:, :ts]
    u = gu[:, ts:]
    # SwiGLU in f32.  exp() runs on the EUP; the divide is kept exact so the
    # kernel matches the f32 reference (flip to pl.reciprocal(..., approx=True)
    # if slightly looser numerics are acceptable and the kernel is VALU-bound).
    h = (g / (1.0 + jnp.exp(-g))) * u
    # Partial down-projection for this split tile, accumulated in f32.
    acc_ref[...] += jnp.dot(h.astype(wd_ref.dtype), wd_ref[...],
                            preferred_element_type=jnp.float32)

    @pl.when(j == pl.num_programs(1) - 1)
    def _():
        o_ref[...] = acc_ref[...].astype(o_ref.dtype)


@functools.partial(jax.jit,
                   static_argnames=("ts", "split", "tm", "weight_buffer_count"))
def _mlp_forward(x, w_gu, w_down, *, ts, split, tm, weight_buffer_count):
    B, S, H = x.shape
    split_pad = w_down.shape[0]
    n_j = split_pad // ts
    T = B * S

    itm = jnp.dtype(x.dtype).itemsize
    itw = jnp.dtype(w_gu.dtype).itemsize
    sub = {4: 8, 2: 16, 1: 32}.get(itm, 8)

    chip = _chip_generation()
    if tm is None:
        tm = _DEFAULT_TILES.get(chip, _DEFAULT_TILES["unknown"])[0]
    # Clamp the token tile to the (padded) token count, sublane-aligned.
    tm = _round_up(max(sub, min(tm, _round_up(T, sub))), sub)

    # VMEM budget: double-buffered x/out, `weight_buffer_count`-buffered weight
    # tiles, f32 accumulator, and the f32 gu/h matmul intermediates.
    wbuf = max(2, weight_buffer_count)
    vmem_cap = _vmem_capacity_bytes()
    budget = int(0.85 * vmem_cap)

    def vmem_needed(tm_):
        blocks = (2 * tm_ * H * itm               # x tile (double-buffered)
                  + wbuf * H * 2 * ts * itw       # fused [gate|up] tile
                  + wbuf * ts * H * itw           # down tile
                  + 2 * tm_ * H * itm)            # out tile
        f32_work = (tm_ * H * 4                   # accumulator scratch
                    + tm_ * 2 * ts * 4            # gu intermediate
                    + tm_ * ts * 4)               # h intermediate
        return blocks + f32_work

    # Shrink tm (never ts: ts fixes the weight packing, and tm is the
    # weight-reuse / roofline lever) until the working set fits the chip.
    while vmem_needed(tm) > budget and tm > sub:
        tm = max(sub, _round_up(tm // 2, sub))

    T_pad = _round_up(T, tm)
    n_i = T_pad // tm

    x2d = x.reshape(T, H)
    if T_pad != T:
        x2d = jnp.pad(x2d, ((0, T_pad - T), (0, 0)))

    vmem_limit = min(budget, max(32 << 20, int(1.2 * vmem_needed(tm)) + (4 << 20)))

    cost = pl.CostEstimate(
        flops=6 * T * H * split,                    # gate + up + down matmuls
        transcendentals=T * split,                  # sigmoid exp
        bytes_accessed=(2 * T * H * itm             # x in, out
                        + n_i * 3 * H * split_pad * itw),  # weights re-streamed per i
    )

    # Optional deeper weight pipelining for the decode / small-T regime.
    wgu_kwargs = {}
    wd_kwargs = {}
    if weight_buffer_count > 2:
        wgu_kwargs["pipeline_mode"] = pl.Buffered(weight_buffer_count)
        wd_kwargs["pipeline_mode"] = pl.Buffered(weight_buffer_count)

    # TODO(synk): v7x decode (n_i == 1) leaves the 2nd TensorCore idle; a
    # split-dim shard across cores with a cross-core reduce would fix it.
    # TODO(synk): x/out only change every n_j steps; single-buffering them
    # would reclaim VMEM for a larger tm.
    out2d = pl.pallas_call(
        functools.partial(_mlp_kernel, ts=ts),
        out_shape=jax.ShapeDtypeStruct((T_pad, H), x.dtype),
        grid_spec=pltpu.PrefetchScalarGridSpec(
            num_scalar_prefetch=0,
            grid=(n_i, n_j),  # tokens (parallel) outer, split_dim (reduction) last
            in_specs=[
                pl.BlockSpec((tm, H), lambda i, j: (i, 0)),                 # x
                pl.BlockSpec((H, 2 * ts), lambda i, j: (0, j), **wgu_kwargs),  # [gate|up]
                pl.BlockSpec((ts, H), lambda i, j: (j, 0), **wd_kwargs),       # down
            ],
            out_specs=pl.BlockSpec((tm, H), lambda i, j: (i, 0)),
            scratch_shapes=[pltpu.VMEM((tm, H), jnp.float32)],  # f32 accumulator
        ),
        compiler_params=pltpu.CompilerParams(
            dimension_semantics=("parallel", "arbitrary"),
            vmem_limit_bytes=vmem_limit,
        ),
        cost_estimate=cost,
    )(x2d, w_gu, w_down)
    return out2d[:T].reshape(B, S, H)


def tpi_llama_mlp(x, weights: PackedLlamaMLPWeights, *, tm: Optional[int] = None,
                  weight_buffer_count: int = 2):
    """Forward pass on pre-packed weights (packing is load-time, not per-call)."""
    return _mlp_forward(x, weights.w_gu, weights.w_down, ts=weights.ts,
                        split=weights.split, tm=tm,
                        weight_buffer_count=weight_buffer_count)


def tpi_llama_mlp_unpacked(x, w_gate, w_up, w_down, *, tm=None, ts=None):
    """Convenience path; re-packs every call — prefer pack_llama_mlp_weights once."""
    return tpi_llama_mlp(x, pack_llama_mlp_weights(w_gate, w_up, w_down, ts=ts), tm=tm)


def reference_mlp(x, w_gate, w_up, w_down):
    g = x @ w_gate
    u = x @ w_up
    return (jax.nn.silu(g) * u) @ w_down


if __name__ == "__main__":
    # Small but layout-realistic config: hidden_size=128 (one full lane width),
    # split_dim=384 with ts=256 (exercises the zero-padded last split tile and a
    # 2-step reduction), seq=9 (tokens not a tile multiple -> padded token tile).
    B, S, H, SPLIT = 2, 9, 128, 384
    key = jax.random.PRNGKey(0)
    kx, kg, ku, kd = jax.random.split(key, 4)

    x = jax.random.normal(kx, (B, S, H), dtype=jnp.float32)
    w_gate = jax.random.uniform(kg, (H, SPLIT), jnp.float32, -1.0, 1.0) / jnp.sqrt(H)
    w_up = jax.random.uniform(ku, (H, SPLIT), jnp.float32, -1.0, 1.0) / jnp.sqrt(H)
    w_down = jax.random.uniform(kd, (SPLIT, H), jnp.float32, -1.0, 1.0) / jnp.sqrt(SPLIT)
    # TODO(synk): mlp_bias=True path (bias add) not implemented; Llama default is bias=False.

    # Weight packing happens ONCE at load time — hoisted out of the forward pass.
    packed = pack_llama_mlp_weights(w_gate, w_up, w_down, ts=256)
    packed = PackedLlamaMLPWeights(jax.block_until_ready(packed.w_gu),
                                   jax.block_until_ready(packed.w_down),
                                   packed.ts, packed.split)

    out = tpi_llama_mlp(x, packed)
    out = jax.block_until_ready(out)

    ref = reference_mlp(x, w_gate, w_up, w_down)
    assert out.shape == (B, S, H)
    assert jnp.allclose(out, ref, atol=1e-4, rtol=1e-4), float(jnp.max(jnp.abs(out - ref)))
    print("KERNEL_OK")
</pallas_src>

<mosaic_0001>
module attributes {stable_mosaic.version = 11 : i64} {
  func.func @_mlp_kernel(%arg0: i32, %arg1: i32, %arg2: memref<24x128xf32, #tpu.memory_space<vmem>>, %arg3: memref<128x512xf32, #tpu.memory_space<vmem>>, %arg4: memref<256x128xf32, #tpu.memory_space<vmem>>, %arg5: memref<24x128xf32, #tpu.memory_space<vmem>>, %arg6: memref<24x128xf32, #tpu.memory_space<vmem>>) attributes {dimension_semantics = [#tpu.dimension_semantics<parallel>, #tpu.dimension_semantics<arbitrary>], iteration_bounds = array<i64: 1, 2>, scalar_prefetch = 0 : i64, scratch_operands = 1 : i64, tpu.core_type = #tpu.core_type<tc>, window_params = [{transform_indices = @transform_0, window_bounds = array<i64: 24, 128>}, {transform_indices = @transform_1, window_bounds = array<i64: 128, 512>}, {transform_indices = @transform_2, window_bounds = array<i64: 256, 128>}, {transform_indices = @transform_3, window_bounds = array<i64: 24, 128>}]} {
    %c0_i32 = arith.constant 0 : i32
    %0 = arith.cmpi eq, %arg1, %c0_i32 : i32
    %1 = arith.extui %0 : i1 to i32
    %c0_i32_0 = arith.constant 0 : i32
    %2 = arith.cmpi ne, %1, %c0_i32_0 : i32
    scf.if %2 {
      %cst_14 = arith.constant 0.000000e+00 : f32
      %23 = vector.broadcast %cst_14 : f32 to vector<24x128xf32>
      %c0_15 = arith.constant 0 : index
      %c0_16 = arith.constant 0 : index
      %24 = vector.load %arg6[%c0_15, %c0_16] : memref<24x128xf32, #tpu.memory_space<vmem>>, vector<24x128xf32>
      tpu.vector_store %arg6[%c0_15, %c0_16], %23 {strides = array<i32>} : memref<24x128xf32, #tpu.memory_space<vmem>>, vector<24x128xf32>,
    } else {
    }
    %c0 = arith.constant 0 : index
    %c0_1 = arith.constant 0 : index
    %3 = vector.load %arg2[%c0, %c0_1] : memref<24x128xf32, #tpu.memory_space<vmem>>, vector<24x128xf32>
    %c0_2 = arith.constant 0 : index
    %c0_3 = arith.constant 0 : index
    %4 = vector.load %arg3[%c0_2, %c0_3] : memref<128x512xf32, #tpu.memory_space<vmem>>, vector<128x512xf32>
    %cst = arith.constant dense<0.000000e+00> : vector<24x512xf32>
    %5 = tpu.matmul %3, %4, %cst {dimension_numbers = #tpu.dot_dimension_numbers<[1], [0], [0], [1], [0, 0, 1, 1], [], []>} : vector<24x128xf32>, vector<128x512xf32>, vector<24x512xf32> -> vector<24x512xf32>
    %6 = vector.extract_strided_slice %5 {offsets = [0, 0], sizes = [24, 256], strides = [1, 1]} : vector<24x512xf32> to vector<24x256xf32>
    %7 = vector.extract_strided_slice %5 {offsets = [0, 256], sizes = [24, 256], strides = [1, 1]} : vector<24x512xf32> to vector<24x256xf32>
    %cst_4 = arith.constant 0.000000e+00 : f32
    %8 = vector.broadcast %cst_4 : f32 to vector<24x256xf32>
    %9 = arith.subf %8, %6 : vector<24x256xf32>
    %10 = math.exp %9 : vector<24x256xf32>
    %cst_5 = arith.constant 1.000000e+00 : f32
    %11 = vector.broadcast %cst_5 : f32 to vector<24x256xf32>
    %12 = arith.addf %11, %10 : vector<24x256xf32>
    %13 = arith.divf %6, %12 : vector<24x256xf32>
    %14 = arith.mulf %13, %7 : vector<24x256xf32>
    %c0_6 = arith.constant 0 : index
    %c0_7 = arith.constant 0 : index
    %15 = vector.load %arg6[%c0_6, %c0_7] : memref<24x128xf32, #tpu.memory_space<vmem>>, vector<24x128xf32>
    %c0_8 = arith.constant 0 : index
    %c0_9 = arith.constant 0 : index
    %16 = vector.load %arg4[%c0_8, %c0_9] : memref<256x128xf32, #tpu.memory_space<vmem>>, vector<256x128xf32>
    %cst_10 = arith.constant dense<0.000000e+00> : vector<24x128xf32>
    %17 = tpu.matmul %14, %16, %cst_10 {dimension_numbers = #tpu.dot_dimension_numbers<[1], [0], [0], [1], [0, 0, 1, 1], [], []>} : vector<24x256xf32>, vector<256x128xf32>, vector<24x128xf32> -> vector<24x128xf32>
    %18 = arith.addf %15, %17 : vector<24x128xf32>
    %c0_11 = arith.constant 0 : index
    %c0_12 = arith.constant 0 : index
    %19 = vector.load %arg6[%c0_11, %c0_12] : memref<24x128xf32, #tpu.memory_space<vmem>>, vector<24x128xf32>
    tpu.vector_store %arg6[%c0_11, %c0_12], %18 {strides = array<i32>} : memref<24x128xf32, #tpu.memory_space<vmem>>, vector<24x128xf32>,
    %c1_i32 = arith.constant 1 : i32
    %20 = arith.cmpi eq, %arg1, %c1_i32 : i32
    %21 = arith.extui %20 : i1 to i32
    %c0_i32_13 = arith.constant 0 : i32
    %22 = arith.cmpi ne, %21, %c0_i32_13 : i32
    scf.if %22 {
      %c0_14 = arith.constant 0 : index
      %c0_15 = arith.constant 0 : index
      %23 = vector.load %arg6[%c0_14, %c0_15] : memref<24x128xf32, #tpu.memory_space<vmem>>, vector<24x128xf32>
      %c0_16 = arith.constant 0 : index
      %c0_17 = arith.constant 0 : index
      %24 = vector.load %arg5[%c0_16, %c0_17] : memref<24x128xf32, #tpu.memory_space<vmem>>, vector<24x128xf32>
      tpu.vector_store %arg5[%c0_16, %c0_17], %23 {strides = array<i32>} : memref<24x128xf32, #tpu.memory_space<vmem>>, vector<24x128xf32>,
    } else {
    }
    return
  }
  func.func @transform_0(%arg0: i32, %arg1: i32) -> (i32, i32) {
    %c0_i32 = arith.constant 0 : i32
    %c0_i32_0 = arith.constant 0 : i32
    return %arg0, %c0_i32 : i32, i32
  }
  func.func @transform_1(%arg0: i32, %arg1: i32) -> (i32, i32) {
    %c0_i32 = arith.constant 0 : i32
    %c0_i32_0 = arith.constant 0 : i32
    return %c0_i32, %arg1 : i32, i32
  }
  func.func @transform_2(%arg0: i32, %arg1: i32) -> (i32, i32) {
    %c0_i32 = arith.constant 0 : i32
    %c0_i32_0 = arith.constant 0 : i32
    return %arg1, %c0_i32 : i32, i32
  }
  func.func @transform_3(%arg0: i32, %arg1: i32) -> (i32, i32) {
    %c0_i32 = arith.constant 0 : i32
    %c0_i32_0 = arith.constant 0 : i32
    return %arg0, %c0_i32 : i32, i32
  }
}

</mosaic_0001>

<llo_original>
// kernel: _mlp_forward.1
$region0: #{_mlp_forward.1}
  #allocation0 [shape = 'u32[]', space=smem, size = 0x4, offset = 0x4, fixed_abs, tag = 'smem constant byte address 0x4 - core index']
  #allocation1 [shape = 'u32[144,128]{1,0:T(1,128)}', space=vmem, size = 0x12000, scoped, tag = 'internal scratch']
  #allocation2 [shape = 'f32[24,128]{1,0:T(8,128)}', space=vmem, size = 0x3000, scoped, tag = 'scratch operand']
  %s0 = inlined_call_operand.vmem [shape: f32[24,128], index: 0, kind: input, shape index: {}]
  %s1 = inlined_call_operand.hbm [shape: f32[128,1024], index: 1, kind: input, shape index: {}]
  %s2 = inlined_call_operand.hbm [shape: f32[512,128], index: 2, kind: input, shape index: {}]
  %s3 = inlined_call_operand.vmem [shape: f32[24,128], index: 3, kind: output, shape index: {}]
  %s4 = sld [smem:[#allocation0]]
  $region61: #{_mlp_forward.1} parent=0
    _
  %s6 = ssub.s32 1, %s4
  %s7 = scalar_select 0, %s6, %s4
  $region1: #{_mlp_forward.1} parent=0
    #allocation3 [shape = 'u8[524288]{0}', space=vmem, size = 0x80000, scoped, tag = 'input window, operand 1']
    #allocation4 [shape = 's32[2]{0}', space=sflag, size = 0x8, scoped, tag = 'scoped memory for _mlp_forward.1']
    #allocation5 [shape = 'u8[262144]{0}', space=vmem, size = 0x40000, scoped, tag = 'input window, operand 2']
    #allocation6 [shape = 's32[2]{0}', space=sflag, size = 0x8, scoped, tag = 'scoped memory for _mlp_forward.1']
    %8 = vsyncpa [#allocation4], 0
    %s9 = scalar_lea.sflag [#allocation4], 1
    %10 = vsyncpa %s9, 0
    %11 = vsyncpa [#allocation6], 0
    %s12 = scalar_lea.sflag [#allocation6], 1
    %13 = vsyncpa %s12, 0
    loop: start=0, step=1, limit=4
    $region2: #{_mlp_forward.1} parent=1 // loop_pre_header
      _
    $region3: #{_mlp_forward.1} parent=1 // loop_header
      %s15 = sphi 0, %s19
      %p16 = scmp.ge.s32.totalorder %s15, 4
      %s22 = sphi 0, %s34
      %s23 = sphi 0, %s30
      %s24 = sphi 0, %s22
      %s25 = sphi 0, %s23
      %s26 = sphi 0, %s24
      %s27 = sphi 0, %s25
      %s37 = sphi 0, %s39
      %s40 = sphi 0, %s37
      %s41 = sphi 0, %s40
      %s57 = sphi 0, %s41
      %s63 = sphi 0, %s65
      %s66 = sphi 0, %s63
      %s67 = sphi 0, %s66
      %s83 = sphi 0, %s67
      %s89 = sphi 0, %s91
      %s92 = sphi 0, %s89
      %s93 = sphi 0, %s92
      %s109 = sphi 0, %s93
      %s115 = sphi 0, %s117
      %s118 = sphi 0, %s115
      %s119 = sphi 0, %s118
      %s135 = sphi 0, %s119
    $region4: #{_mlp_forward.1} parent=1 // loop_header_branch
      %18 = sbr.rel (%p16) target = $region8
    $region5: #{_mlp_forward.1} parent=1 // loop_body
      %s20 = ssub.s32 %s15, 1
      %s21 = ssub.s32 %s15, 2
      %s28 = sadd.s32 1, %s23
      %p29 = scmp.ge.s32.totalorder %s28, 2
      %s30 = scalar_select %p29, 0, %s28
      %s31 = sadd.s32 1, %s22
      %s32 = scalar_select %p29, %s31, %s22
      %p33 = scmp.ge.s32.totalorder %s32, 1
      %s34 = scalar_select %p33, 0, %s32
      %s35 = ssub.s32 %s22, %s34
      %p36 = scmp.eq.s32.totalorder %s35, 0
      %s38 = sadd.s32 %s37, 1
      %s39 = scalar_select %p36, %s37, %s38
      %p42 = pneg %p36
      %p43 = scmp.eq.s32.totalorder %s15, 1
      %p44 = por %p42, %p43
      %p45 = scmp.ne.s32.totalorder %s37, %s40
      %p46 = scmp.eq.s32.totalorder %s15, 0
      %p47 = por %p45, %p46
      %p48 = scmp.ne.s32.totalorder %s37, %s40
      %p49 = scmp.eq.s32.totalorder %s20, 1
      %p50 = por %p48, %p49
      %p51 = scmp.ne.s32.totalorder %s40, %s41
      %p52 = scmp.eq.s32.totalorder %s20, 0
      %p53 = por %p51, %p52
      %p54 = scmp.ne.s32.totalorder %s40, %s41
      %p55 = scmp.eq.s32.totalorder %s21, 1
      %p56 = por %p54, %p55
      %p58 = scmp.ne.s32.totalorder %s41, %s57
      %p59 = scmp.eq.s32.totalorder %s21, 0
      %p60 = por %p58, %p59
      %s61 = ssub.s32 %s23, %s30
      %p62 = scmp.eq.s32.totalorder %s61, 0
      %s64 = sadd.s32 %s63, 1
      %s65 = scalar_select %p62, %s63, %s64
      %p68 = pneg %p62
      %p69 = scmp.eq.s32.totalorder %s15, 1
      %p70 = por %p68, %p69
      %p71 = scmp.ne.s32.totalorder %s63, %s66
      %p72 = scmp.eq.s32.totalorder %s15, 0
      %p73 = por %p71, %p72
      %p74 = scmp.ne.s32.totalorder %s63, %s66
      %p75 = scmp.eq.s32.totalorder %s20, 1
      %p76 = por %p74, %p75
      %p77 = scmp.ne.s32.totalorder %s66, %s67
      %p78 = scmp.eq.s32.totalorder %s20, 0
      %p79 = por %p77, %p78
      %p80 = scmp.ne.s32.totalorder %s66, %s67
      %p81 = scmp.eq.s32.totalorder %s21, 1
      %p82 = por %p80, %p81
      %p84 = scmp.ne.s32.totalorder %s67, %s83
      %p85 = scmp.eq.s32.totalorder %s21, 0
      %p86 = por %p84, %p85
      %s87 = ssub.s32 %s23, %s30
      %p88 = scmp.eq.s32.totalorder %s87, 0
      %s90 = sadd.s32 %s89, 1
      %s91 = scalar_select %p88, %s89, %s90
      %p94 = pneg %p88
      %p95 = scmp.eq.s32.totalorder %s15, 1
      %p96 = por %p94, %p95
      %p97 = scmp.ne.s32.totalorder %s89, %s92
      %p98 = scmp.eq.s32.totalorder %s15, 0
      %p99 = por %p97, %p98
      %p100 = scmp.ne.s32.totalorder %s89, %s92
      %p101 = scmp.eq.s32.totalorder %s20, 1
      %p102 = por %p100, %p101
      %p103 = scmp.ne.s32.totalorder %s92, %s93
      %p104 = scmp.eq.s32.totalorder %s20, 0
      %p105 = por %p103, %p104
      %p106 = scmp.ne.s32.totalorder %s92, %s93
      %p107 = scmp.eq.s32.totalorder %s21, 1
      %p108 = por %p106, %p107
      %p110 = scmp.ne.s32.totalorder %s93, %s109
      %p111 = scmp.eq.s32.totalorder %s21, 0
      %p112 = por %p110, %p111
      %s113 = ssub.s32 %s22, %s34
      %p114 = scmp.eq.s32.totalorder %s113, 0
      %s116 = sadd.s32 %s115, 1
      %s117 = scalar_select %p114, %s115, %s116
      %p120 = pneg %p114
      %p121 = scmp.eq.s32.totalorder %s15, 1
      %p122 = por %p120, %p121
      %p123 = scmp.ne.s32.totalorder %s115, %s118
      %p124 = scmp.eq.s32.totalorder %s15, 0
      %p125 = por %p123, %p124
      %p126 = scmp.ne.s32.totalorder %s115, %s118
      %p127 = scmp.eq.s32.totalorder %s20, 1
      %p128 = por %p126, %p127
      %p129 = scmp.ne.s32.totalorder %s118, %s119
      %p130 = scmp.eq.s32.totalorder %s20, 0
      %p131 = por %p129, %p130
      %p132 = scmp.ne.s32.totalorder %s118, %s119
      %p133 = scmp.eq.s32.totalorder %s21, 1
      %p134 = por %p132, %p133
      %p136 = scmp.ne.s32.totalorder %s119, %s135
      %p137 = scmp.eq.s32.totalorder %s21, 0
      %p138 = por %p136, %p137
      %p139 = scmp.le.s32.totalorder 1, %s15
      %p140 = scmp.lt.s32.totalorder %s15, 3
      %p141 = pnand %p139, %p140
      %p142 = pneg %p141
      // Predicated region
      $region9: #{_mlp_forward.1} parent=5 // pred_check
        _
      $region10: #{_mlp_forward.1} parent=5 // pred_check_branch
        %144 = sbr.rel (%p141) target = $region12
      $region11: #{_mlp_forward.1} parent=5 // pred_region
        %s145 = ssub.s32 %s15, 1
        // Predicated region
        $region13: #{_mlp_forward.1} parent=11 // pred_check
          %p146 = pneg %p53
        $region14: #{_mlp_forward.1} parent=11 // pred_check_branch
          %148 = sbr.rel (%p146) target = $region16
        $region15: #{_mlp_forward.1} parent=11 // pred_region
          %s149 = smul.u32 3, %s24
          %p150 = scmp.lt.s32.totalorder %s149, 2
          %s151 = scalar_select %p150, %s149, 2
          %s152 = smul.addr %s151, 8
          %s153 = scalar_lea.vmem %s0, %s152
          %s154 = smul.u32 3, %s24
        $region16: #{_mlp_forward.1} parent=11 // pred_fallthru
          _
      $region12: #{_mlp_forward.1} parent=5 // pred_fallthru
        _
      %p155 = scmp.lt.s32.totalorder %s15, 2
      // Predicated region
      $region17: #{_mlp_forward.1} parent=5 // pred_check
        %p156 = pneg %p155
      $region18: #{_mlp_forward.1} parent=5 // pred_check_branch
        %158 = sbr.rel (%p156) target = $region20
      $region19: #{_mlp_forward.1} parent=5 // pred_region
        // Predicated region
        $region21: #{_mlp_forward.1} parent=19 // pred_check
          %p159 = pneg %p73
        $region22: #{_mlp_forward.1} parent=19 // pred_check_branch
          %161 = sbr.rel (%p159) target = $region24
        $region23: #{_mlp_forward.1} parent=19 // pred_region
          %s162 = sand.u32 %s63, 1
          %s163 = scalar_lea.sflag [#allocation4], %s162
          %s164 = sand.u32 %s63, 1
          %s165 = smul.addr %s164, 512
          %s166 = scalar_lea.vmem [#allocation3], %s165
          %s167 = smul.u32 4, %s23
          %s169 = ssub.s32 8192, 8192
          %170 = vsyncadd %s163, %s169
          %s171 = smul.addr %s167, 128
          %s172 = scalar_lea.hbm %s1, %s171
          %s173 = sshll.u32 %s166, 4
          %s174 = int_to_ptr.vmem [resolvable:$true] %s173
          %179 = dma.hbm_to_vmem [thread:$0]  %s172, 8192, %s174, %s163, 1024, 512, 32
        $region24: #{_mlp_forward.1} parent=19 // pred_fallthru
          _
        // Predicated region
        $region25: #{_mlp_forward.1} parent=19 // pred_check
          %p180 = pneg %p99
        $region26: #{_mlp_forward.1} parent=19 // pred_check_branch
          %182 = sbr.rel (%p180) target = $region28
        $region27: #{_mlp_forward.1} parent=19 // pred_region
          %s183 = sand.u32 %s89, 1
          %s184 = scalar_lea.sflag [#allocation6], %s183
          %s185 = sand.u32 %s89, 1
          %s186 = smul.addr %s185, 256
          %s187 = scalar_lea.vmem [#allocation5], %s186
          %s188 = smul.u32 32, %s23
          %s190 = ssub.s32 4096, 4096
          %191 = vsyncadd %s184, %s190
          %s192 = smul.addr %s188, 128
          %s193 = scalar_lea.hbm %s2, %s192
          %s194 = sshll.u32 %s187, 4
          %s195 = int_to_ptr.vmem [resolvable:$true] %s194
          %200 = dma.hbm_to_vmem [thread:$0]  %s193, 4096, %s195, %s184, 128, 128, 8
        $region28: #{_mlp_forward.1} parent=19 // pred_fallthru
          _
      $region20: #{_mlp_forward.1} parent=5 // pred_fallthru
        _
      %p201 = scmp.le.s32.totalorder 1, %s15
      %p202 = scmp.lt.s32.totalorder %s15, 3
      %p203 = pnand %p201, %p202
      %p204 = pneg %p203
      // Predicated region
      $region29: #{_mlp_forward.1} parent=5 // pred_check
        _
      $region30: #{_mlp_forward.1} parent=5 // pred_check_branch
        %206 = sbr.rel (%p203) target = $region32
      $region31: #{_mlp_forward.1} parent=5 // pred_region
        %s207 = ssub.s32 %s15, 1
        %s208 = sand.u32 %s66, 1
        %s209 = scalar_lea.sflag [#allocation4], %s208
        %s210 = sand.u32 %s66, 1
        %s211 = smul.addr %s210, 512
        %s212 = scalar_lea.vmem [#allocation3], %s211
        // Predicated region
        $region33: #{_mlp_forward.1} parent=31 // pred_check
          %p213 = pneg %p79
        $region34: #{_mlp_forward.1} parent=31 // pred_check_branch
          %215 = sbr.rel (%p213) target = $region36
        $region35: #{_mlp_forward.1} parent=31 // pred_region
          %216 = dma.done %s209, 8192
        $region36: #{_mlp_forward.1} parent=31 // pred_fallthru
          _
        %s217 = sand.u32 %s92, 1
        %s218 = scalar_lea.sflag [#allocation6], %s217
        %s219 = sand.u32 %s92, 1
        %s220 = smul.addr %s219, 256
        %s221 = scalar_lea.vmem [#allocation5], %s220
        // Predicated region
        $region37: #{_mlp_forward.1} parent=31 // pred_check
          %p222 = pneg %p105
        $region38: #{_mlp_forward.1} parent=31 // pred_check_branch
          %224 = sbr.rel (%p222) target = $region40
        $region39: #{_mlp_forward.1} parent=31 // pred_region
          %225 = dma.done %s218, 4096
        $region40: #{_mlp_forward.1} parent=31 // pred_fallthru
          _
        %s226 = smul.u32 3, %s24
        %p227 = scmp.lt.s32.totalorder %s226, 2
        %s228 = scalar_select %p227, %s226, 2
        %s229 = smul.addr %s228, 8
        %s230 = scalar_lea.vmem %s0, %s229
        %p231 = pneg %p53
        %p232 = pneg %p50
        %s233 = sand.u32 %s66, 1
        %s234 = scalar_lea.sflag [#allocation4], %s233
        %s235 = sand.u32 %s66, 1
        %s236 = smul.addr %s235, 512
        %s237 = scalar_lea.vmem [#allocation3], %s236
        %p238 = pneg %p79
        %p239 = pneg %p76
        %s240 = sand.u32 %s92, 1
        %s241 = scalar_lea.sflag [#allocation6], %s240
        %s242 = sand.u32 %s92, 1
        %s243 = smul.addr %s242, 256
        %s244 = scalar_lea.vmem [#allocation5], %s243
        %p245 = pneg %p105
        %p246 = pneg %p102
        %p247 = pneg %p131
        %p248 = pneg %p128
        %s249 = smul.u32 3, %s24
        %p250 = scmp.lt.s32.totalorder %s249, 2
        %s251 = scalar_select %p250, %s249, 2
        %s252 = smul.addr %s251, 8
        %s253 = scalar_lea.vmem %s3, %s252
        %s254 = smul.u32 3, %s24
        %p255 = scmp.lt.s32.totalorder %s254, 2
        %s256 = scalar_select %p255, %s254, 2
        %s257 = smul.addr %s256, 8
        %s258 = scalar_lea.vmem %s0, %s257
        %s259 = smul.u32 3, %s24
        %s260 = smul.u32 4, %s25
        %s261 = smul.u32 32, %s25
        %s262 = smul.u32 3, %s24
        %p263 = scmp.lt.s32.totalorder %s262, 2
        %s264 = scalar_select %p263, %s262, 2
        %s265 = smul.addr %s264, 8
        %s266 = scalar_lea.vmem %s3, %s265
        %s267 = smul.u32 3, %s24
        %p268 = scmp.eq.s32.totalorder %s25, 0
        // Predicated region
        $region41: #{_mlp_forward.1} parent=31 // pred_check
          %p269 = pneg %p268
        $region42: #{_mlp_forward.1} parent=31 // pred_check_branch
          %271 = sbr.rel (%p269) target = $region44
        $region43: #{_mlp_forward.1} parent=31 // pred_region
          %272 = vst [vmem:[#allocation2] sm:$0xff] 0.0
          %273 = vst [vmem:[#allocation2 + $0x8] sm:$0xff] 0.0
          %274 = vst [vmem:[#allocation2 + $0x10] sm:$0xff] 0.0
        $region44: #{_mlp_forward.1} parent=31 // pred_fallthru
          _
        %v275 = vld [vmem:[%s258] sm:$0xff]
        %v276 = vld [vmem:[%s258 + $0x8] sm:$0xff]
        %v277 = vld [vmem:[%s258 + $0x10] sm:$0xff]
        %v278 = vld [vmem:[%s212] sm:$0xff]
        %v279 = vld [vmem:[%s212 + $0x8] sm:$0xff]
        %v280 = vld [vmem:[%s212 + $0x10] sm:$0xff]
        %v281 = vld [vmem:[%s212 + $0x18] sm:$0xff]
        %v282 = vld [vmem:[%s212 + $0x20] sm:$0xff]
        %v283 = vld [vmem:[%s212 + $0x28] sm:$0xff]
        %v284 = vld [vmem:[%s212 + $0x30] sm:$0xff]
        %v285 = vld [vmem:[%s212 + $0x38] sm:$0xff]
        %v286 = vld [vmem:[%s212 + $0x40] sm:$0xff]
        %v287 = vld [vmem:[%s212 + $0x48] sm:$0xff]
        %v288 = vld [vmem:[%s212 + $0x50] sm:$0xff]
        %v289 = vld [vmem:[%s212 + $0x58] sm:$0xff]
        %v290 = vld [vmem:[%s212 + $0x60] sm:$0xff]
        %v291 = vld [vmem:[%s212 + $0x68] sm:$0xff]
        %v292 = vld [vmem:[%s212 + $0x70] sm:$0xff]
        %v293 = vld [vmem:[%s212 + $0x78] sm:$0xff]
        %v294 = vld [vmem:[%s212 + $0x80] sm:$0xff]
        %v295 = vld [vmem:[%s212 + $0x88] sm:$0xff]
        %v296 = vld [vmem:[%s212 + $0x90] sm:$0xff]
        %v297 = vld [vmem:[%s212 + $0x98] sm:$0xff]
        %v298 = vld [vmem:[%s212 + $0xa0] sm:$0xff]
        %v299 = vld [vmem:[%s212 + $0xa8] sm:$0xff]
        %v300 = vld [vmem:[%s212 + $0xb0] sm:$0xff]
        %v301 = vld [vmem:[%s212 + $0xb8] sm:$0xff]
        %v302 = vld [vmem:[%s212 + $0xc0] sm:$0xff]
        %v303 = vld [vmem:[%s212 + $0xc8] sm:$0xff]
        %v304 = vld [vmem:[%s212 + $0xd0] sm:$0xff]
        %v305 = vld [vmem:[%s212 + $0xd8] sm:$0xff]
        %v306 = vld [vmem:[%s212 + $0xe0] sm:$0xff]
        %v307 = vld [vmem:[%s212 + $0xe8] sm:$0xff]
        %v308 = vld [vmem:[%s212 + $0xf0] sm:$0xff]
        %v309 = vld [vmem:[%s212 + $0xf8] sm:$0xff]
        %v310 = vld [vmem:[%s212 + $0x100] sm:$0xff]
        %v311 = vld [vmem:[%s212 + $0x108] sm:$0xff]
        %v312 = vld [vmem:[%s212 + $0x110] sm:$0xff]
        %v313 = vld [vmem:[%s212 + $0x118] sm:$0xff]
        %v314 = vld [vmem:[%s212 + $0x120] sm:$0xff]
        %v315 = vld [vmem:[%s212 + $0x128] sm:$0xff]
        %v316 = vld [vmem:[%s212 + $0x130] sm:$0xff]
        %v317 = vld [vmem:[%s212 + $0x138] sm:$0xff]
        %v318 = vld [vmem:[%s212 + $0x140] sm:$0xff]
        %v319 = vld [vmem:[%s212 + $0x148] sm:$0xff]
        %v320 = vld [vmem:[%s212 + $0x150] sm:$0xff]
        %v321 = vld [vmem:[%s212 + $0x158] sm:$0xff]
        %v322 = vld [vmem:[%s212 + $0x160] sm:$0xff]
        %v323 = vld [vmem:[%s212 + $0x168] sm:$0xff]
        %v324 = vld [vmem:[%s212 + $0x170] sm:$0xff]
        %v325 = vld [vmem:[%s212 + $0x178] sm:$0xff]
        %v326 = vld [vmem:[%s212 + $0x180] sm:$0xff]
        %v327 = vld [vmem:[%s212 + $0x188] sm:$0xff]
        %v328 = vld [vmem:[%s212 + $0x190] sm:$0xff]
        %v329 = vld [vmem:[%s212 + $0x198] sm:$0xff]
        %v330 = vld [vmem:[%s212 + $0x1a0] sm:$0xff]
        %v331 = vld [vmem:[%s212 + $0x1a8] sm:$0xff]
        %v332 = vld [vmem:[%s212 + $0x1b0] sm:$0xff]
        %v333 = vld [vmem:[%s212 + $0x1b8] sm:$0xff]
        %v334 = vld [vmem:[%s212 + $0x1c0] sm:$0xff]
        %v335 = vld [vmem:[%s212 + $0x1c8] sm:$0xff]
        %v336 = vld [vmem:[%s212 + $0x1d0] sm:$0xff]
        %v337 = vld [vmem:[%s212 + $0x1d8] sm:$0xff]
        %v338 = vld [vmem:[%s212 + $0x1e0] sm:$0xff]
        %v339 = vld [vmem:[%s212 + $0x1e8] sm:$0xff]
        %v340 = vld [vmem:[%s212 + $0x1f0] sm:$0xff]
        %v341 = vld [vmem:[%s212 + $0x1f8] sm:$0xff]
        %342 = vmatprep.subr.mxu0 %v279
        %343 = vmatpush1.msra.mxu0 %v278
        %344 = vmatprep.subr.mxu0 %v283
        %345 = vmatpush1.msra.mxu0 %v282
        %346 = vmatprep.subr.mxu0 %v287
        %347 = vmatpush1.msra.mxu0 %v286
        %348 = vmatprep.subr.mxu0 %v291
        %349 = vmatpush1.msra.mxu0 %v290
        %350 = vmatprep.subr.mxu0 %v295
        %351 = vmatpush1.msra.mxu0 %v294
        %352 = vmatprep.subr.mxu0 %v299
        %353 = vmatpush1.msra.mxu0 %v298
        %354 = vmatprep.subr.mxu0 %v303
        %355 = vmatpush1.msra.mxu0 %v302
        %356 = vmatprep.subr.mxu0 %v307
        %357 = vmatpush1.msra.mxu0 %v306
        %358 = vmatprep.subr.mxu0 %v311
        %359 = vmatpush1.msra.mxu0 %v310
        %360 = vmatprep.subr.mxu0 %v315
        %361 = vmatpush1.msra.mxu0 %v314
        %362 = vmatprep.subr.mxu0 %v319
        %363 = vmatpush1.msra.mxu0 %v318
        %364 = vmatprep.subr.mxu0 %v323
        %365 = vmatpush1.msra.mxu0 %v322
        %366 = vmatprep.subr.mxu0 %v327
        %367 = vmatpush1.msra.mxu0 %v326
        %368 = vmatprep.subr.mxu0 %v331
        %369 = vmatpush1.msra.mxu0 %v330
        %370 = vmatprep.subr.mxu0 %v335
        %371 = vmatpush1.msra.mxu0 %v334
        %372 = vmatprep.subr.mxu0 %v339
        %373 = vmatpush1.msra.mxu0 %v338
        %374 = vmatprep.subr.mxu0 0.0
        %375 = vmatpush1.msra.mxu0 0.0
        %376 = vmatprep.subr.mxu0 0.0
        %377 = vmatpush1.msra.mxu0 0.0
        %378 = vmatprep.subr.mxu0 0.0
        %379 = vmatpush1.msra.mxu0 0.0
        %380 = vmatprep.subr.mxu0 0.0
        %381 = vmatpush1.msra.mxu0 0.0
        %382 = vmatprep.subr.mxu0 0.0
        %383 = vmatpush1.msra.mxu0 0.0
        %384 = vmatprep.subr.mxu0 0.0
        %385 = vmatpush1.msra.mxu0 0.0
        %386 = vmatprep.subr.mxu0 0.0
        %387 = vmatpush1.msra.mxu0 0.0
        %388 = vmatprep.subr.mxu0 0.0
        %389 = vmatpush1.msra.mxu0 0.0
        %390 = vmatprep.subr.mxu0 0.0
        %391 = vmatpush1.msra.mxu0 0.0
        %392 = vmatprep.subr.mxu0 0.0
        %393 = vmatpush1.msra.mxu0 0.0
        %394 = vmatprep.subr.mxu0 0.0
        %395 = vmatpush1.msra.mxu0 0.0
        %396 = vmatprep.subr.mxu0 0.0
        %397 = vmatpush1.msra.mxu0 0.0
        %398 = vmatprep.subr.mxu0 0.0
        %399 = vmatpush1.msra.mxu0 0.0
        %400 = vmatprep.subr.mxu0 0.0
        %401 = vmatpush1.msra.mxu0 0.0
        %402 = vmatprep.subr.mxu0 0.0
        %403 = vmatpush1.msra.mxu0 0.0
        %404 = vmatprep.subr.mxu0 0.0
        %405 = vmatpush1.msra.mxu0 0.0
        %406 = vmatprep.mubr.f32.mxu0 0.0
        %407 = vmatmul.mubr.f32.gmra.mrb[0].mxu0 %v275
        %v408 = vpop.f32.mrb[0].mxu0
        %v409 = vadd.f32 0.0, %v408
        %v410 = vpop.f32.mrb[0].mxu0
        %v411 = vadd.f32 0.0, %v410
        %412 = vmatprep.mubr.f32.mxu0 0.0
        %413 = vmatmul.mubr.f32.gmra.mrb[0].mxu0 %v276
        %v414 = vpop.f32.mrb[0].mxu0
        %v415 = vadd.f32 0.0, %v414
        %v416 = vpop.f32.mrb[0].mxu0
        %v417 = vadd.f32 0.0, %v416
        %418 = vmatprep.mubr.f32.mxu0 0.0
        %419 = vmatmul.mubr.f32.gmra.mrb[0].mxu0 %v277
        %v420 = vpop.f32.mrb[0].mxu0
        %v421 = vadd.f32 0.0, %v420
        %v422 = vpop.f32.mrb[0].mxu0
        %v423 = vadd.f32 0.0, %v422
        %424 = vdwg.mxu0
        %425 = vmatprep.subr.mxu0 %v281
        %426 = vmatpush1.msra.mxu0 %v280
        %427 = vmatprep.subr.mxu0 %v285
        %428 = vmatpush1.msra.mxu0 %v284
        %429 = vmatprep.subr.mxu0 %v289
        %430 = vmatpush1.msra.mxu0 %v288
        %431 = vmatprep.subr.mxu0 %v293
        %432 = vmatpush1.msra.mxu0 %v292
        %433 = vmatprep.subr.mxu0 %v297
        %434 = vmatpush1.msra.mxu0 %v296
        %435 = vmatprep.subr.mxu0 %v301
        %436 = vmatpush1.msra.mxu0 %v300
        %437 = vmatprep.subr.mxu0 %v305
        %438 = vmatpush1.msra.mxu0 %v304
        %439 = vmatprep.subr.mxu0 %v309
        %440 = vmatpush1.msra.mxu0 %v308
        %441 = vmatprep.subr.mxu0 %v313
        %442 = vmatpush1.msra.mxu0 %v312
        %443 = vmatprep.subr.mxu0 %v317
        %444 = vmatpush1.msra.mxu0 %v316
        %445 = vmatprep.subr.mxu0 %v321
        %446 = vmatpush1.msra.mxu0 %v320
        %447 = vmatprep.subr.mxu0 %v325
        %448 = vmatpush1.msra.mxu0 %v324
        %449 = vmatprep.subr.mxu0 %v329
        %450 = vmatpush1.msra.mxu0 %v328
        %451 = vmatprep.subr.mxu0 %v333
        %452 = vmatpush1.msra.mxu0 %v332
        %453 = vmatprep.subr.mxu0 %v337
        %454 = vmatpush1.msra.mxu0 %v336
        %455 = vmatprep.subr.mxu0 %v341
        %456 = vmatpush1.msra.mxu0 %v340
        %457 = vmatprep.subr.mxu0 0.0
        %458 = vmatpush1.msra.mxu0 0.0
        %459 = vmatprep.subr.mxu0 0.0
        %460 = vmatpush1.msra.mxu0 0.0
        %461 = vmatprep.subr.mxu0 0.0
        %462 = vmatpush1.msra.mxu0 0.0
        %463 = vmatprep.subr.mxu0 0.0
        %464 = vmatpush1.msra.mxu0 0.0
        %465 = vmatprep.subr.mxu0 0.0
        %466 = vmatpush1.msra.mxu0 0.0
        %467 = vmatprep.subr.mxu0 0.0
        %468 = vmatpush1.msra.mxu0 0.0
        %469 = vmatprep.subr.mxu0 0.0
        %470 = vmatpush1.msra.mxu0 0.0
        %471 = vmatprep.subr.mxu0 0.0
        %472 = vmatpush1.msra.mxu0 0.0
        %473 = vmatprep.subr.mxu0 0.0
        %474 = vmatpush1.msra.mxu0 0.0
        %475 = vmatprep.subr.mxu0 0.0
        %476 = vmatpush1.msra.mxu0 0.0
        %477 = vmatprep.subr.mxu0 0.0
        %478 = vmatpush1.msra.mxu0 0.0
        %479 = vmatprep.subr.mxu0 0.0
        %480 = vmatpush1.msra.mxu0 0.0
        %481 = vmatprep.subr.mxu0 0.0
        %482 = vmatpush1.msra.mxu0 0.0
        %483 = vmatprep.subr.mxu0 0.0
        %484 = vmatpush1.msra.mxu0 0.0
        %485 = vmatprep.subr.mxu0 0.0
        %486 = vmatpush1.msra.mxu0 0.0
        %487 = vmatprep.subr.mxu0 0.0
        %488 = vmatpush1.msra.mxu0 0.0
        %489 = vmatprep.mubr.f32.mxu0 0.0
        %490 = vmatmul.mubr.f32.gmra.mrb[0].mxu0 %v275
        %v491 = vpop.f32.mrb[0].mxu0
        %v492 = vadd.f32 0.0, %v491
        %v493 = vpop.f32.mrb[0].mxu0
        %v494 = vadd.f32 0.0, %v493
        %495 = vmatprep.mubr.f32.mxu0 0.0
        %496 = vmatmul.mubr.f32.gmra.mrb[0].mxu0 %v276
        %v497 = vpop.f32.mrb[0].mxu0
        %v498 = vadd.f32 0.0, %v497
        %v499 = vpop.f32.mrb[0].mxu0
        %v500 = vadd.f32 0.0, %v499
        %501 = vmatprep.mubr.f32.mxu0 0.0
        %502 = vmatmul.mubr.f32.gmra.mrb[0].mxu0 %v277
        %v503 = vpop.f32.mrb[0].mxu0
        %v504 = vadd.f32 0.0, %v503
        %v505 = vpop.f32.mrb[0].mxu0
        %v506 = vadd.f32 0.0, %v505
        %507 = vdwg.mxu0
        %v508 = vsub.f32 0.0, %v409
        %v509 = vsub.f32 0.0, %v411
        %v510 = vsub.f32 0.0, %v415
        %v511 = vsub.f32 0.0, %v417
        %v512 = vsub.f32 0.0, %v421
        %v513 = vsub.f32 0.0, %v423
        %v514 = vmul.f32 %v508, 1.442695
        %v515 = vpow.pop %v514
        %v516 = vmul.f32 %v509, 1.442695
        %v517 = vpow.pop %v516
        %v518 = vmul.f32 %v510, 1.442695
        %v519 = vpow.pop %v518
        %v520 = vmul.f32 %v511, 1.442695
        %v521 = vpow.pop %v520
        %v522 = vmul.f32 %v512, 1.442695
        %v523 = vpow.pop %v522
        %v524 = vmul.f32 %v513, 1.442695
        %v525 = vpow.pop %v524
        %v526 = vadd.f32 %v515, 1.0
        %v527 = vadd.f32 %v517, 1.0
        %v528 = vadd.f32 %v519, 1.0
        %v529 = vadd.f32 %v521, 1.0
        %v530 = vadd.f32 %v523, 1.0
        %v531 = vadd.f32 %v525, 1.0
        %v532 = vrcp.pop %v526
        %v533 = vmul.f32 %v409, %v532
        %v534 = vrcp.pop %v527
        %v535 = vmul.f32 %v411, %v534
        %v536 = vrcp.pop %v528
        %v537 = vmul.f32 %v415, %v536
        %v538 = vrcp.pop %v529
        %v539 = vmul.f32 %v417, %v538
        %v540 = vrcp.pop %v530
        %v541 = vmul.f32 %v421, %v540
        %v542 = vrcp.pop %v531
        %v543 = vmul.f32 %v423, %v542
        %v544 = vmul.f32 %v533, %v492
        %v545 = vmul.f32 %v535, %v494
        %v546 = vmul.f32 %v537, %v498
        %v547 = vmul.f32 %v539, %v500
        %v548 = vmul.f32 %v541, %v504
        %v549 = vmul.f32 %v543, %v506
        %v550 = vld [vmem:[#allocation2] sm:$0xff]
        %v551 = vld [vmem:[#allocation2 + $0x8] sm:$0xff]
        %v552 = vld [vmem:[#allocation2 + $0x10] sm:$0xff]
        %v553 = vld [vmem:[%s221] sm:$0xff]
        %v554 = vld [vmem:[%s221 + $0x8] sm:$0xff]
        %v555 = vld [vmem:[%s221 + $0x10] sm:$0xff]
        %v556 = vld [vmem:[%s221 + $0x18] sm:$0xff]
        %v557 = vld [vmem:[%s221 + $0x20] sm:$0xff]
        %v558 = vld [vmem:[%s221 + $0x28] sm:$0xff]
        %v559 = vld [vmem:[%s221 + $0x30] sm:$0xff]
        %v560 = vld [vmem:[%s221 + $0x38] sm:$0xff]
        %v561 = vld [vmem:[%s221 + $0x40] sm:$0xff]
        %v562 = vld [vmem:[%s221 + $0x48] sm:$0xff]
        %v563 = vld [vmem:[%s221 + $0x50] sm:$0xff]
        %v564 = vld [vmem:[%s221 + $0x58] sm:$0xff]
        %v565 = vld [vmem:[%s221 + $0x60] sm:$0xff]
        %v566 = vld [vmem:[%s221 + $0x68] sm:$0xff]
        %v567 = vld [vmem:[%s221 + $0x70] sm:$0xff]
        %v568 = vld [vmem:[%s221 + $0x78] sm:$0xff]
        %v569 = vld [vmem:[%s221 + $0x80] sm:$0xff]
        %v570 = vld [vmem:[%s221 + $0x88] sm:$0xff]
        %v571 = vld [vmem:[%s221 + $0x90] sm:$0xff]
        %v572 = vld [vmem:[%s221 + $0x98] sm:$0xff]
        %v573 = vld [vmem:[%s221 + $0xa0] sm:$0xff]
        %v574 = vld [vmem:[%s221 + $0xa8] sm:$0xff]
        %v575 = vld [vmem:[%s221 + $0xb0] sm:$0xff]
        %v576 = vld [vmem:[%s221 + $0xb8] sm:$0xff]
        %v577 = vld [vmem:[%s221 + $0xc0] sm:$0xff]
        %v578 = vld [vmem:[%s221 + $0xc8] sm:$0xff]
        %v579 = vld [vmem:[%s221 + $0xd0] sm:$0xff]
        %v580 = vld [vmem:[%s221 + $0xd8] sm:$0xff]
        %v581 = vld [vmem:[%s221 + $0xe0] sm:$0xff]
        %v582 = vld [vmem:[%s221 + $0xe8] sm:$0xff]
        %v583 = vld [vmem:[%s221 + $0xf0] sm:$0xff]
        %v584 = vld [vmem:[%s221 + $0xf8] sm:$0xff]
        %585 = vmatprep.subr.mxu0 0.0
        %586 = vmatpush1.msra.mxu0 %v553
        %587 = vmatprep.subr.mxu0 0.0
        %588 = vmatpush1.msra.mxu0 %v554
        %589 = vmatprep.subr.mxu0 0.0
        %590 = vmatpush1.msra.mxu0 %v555
        %591 = vmatprep.subr.mxu0 0.0
        %592 = vmatpush1.msra.mxu0 %v556
        %593 = vmatprep.subr.mxu0 0.0
        %594 = vmatpush1.msra.mxu0 %v557
        %595 = vmatprep.subr.mxu0 0.0
        %596 = vmatpush1.msra.mxu0 %v558
        %597 = vmatprep.subr.mxu0 0.0
        %598 = vmatpush1.msra.mxu0 %v559
        %599 = vmatprep.subr.mxu0 0.0
        %600 = vmatpush1.msra.mxu0 %v560
        %601 = vmatprep.subr.mxu0 0.0
        %602 = vmatpush1.msra.mxu0 %v561
        %603 = vmatprep.subr.mxu0 0.0
        %604 = vmatpush1.msra.mxu0 %v562
        %605 = vmatprep.subr.mxu0 0.0
        %606 = vmatpush1.msra.mxu0 %v563
        %607 = vmatprep.subr.mxu0 0.0
        %608 = vmatpush1.msra.mxu0 %v564
        %609 = vmatprep.subr.mxu0 0.0
        %610 = vmatpush1.msra.mxu0 %v565
        %611 = vmatprep.subr.mxu0 0.0
        %612 = vmatpush1.msra.mxu0 %v566
        %613 = vmatprep.subr.mxu0 0.0
        %614 = vmatpush1.msra.mxu0 %v567
        %615 = vmatprep.subr.mxu0 0.0
        %616 = vmatpush1.msra.mxu0 %v568
        %617 = vmatprep.subr.mxu0 0.0
        %618 = vmatpush1.msra.mxu0 %v569
        %619 = vmatprep.subr.mxu0 0.0
        %620 = vmatpush1.msra.mxu0 %v570
        %621 = vmatprep.subr.mxu0 0.0
        %622 = vmatpush1.msra.mxu0 %v571
        %623 = vmatprep.subr.mxu0 0.0
        %624 = vmatpush1.msra.mxu0 %v572
        %625 = vmatprep.subr.mxu0 0.0
        %626 = vmatpush1.msra.mxu0 %v573
        %627 = vmatprep.subr.mxu0 0.0
        %628 = vmatpush1.msra.mxu0 %v574
        %629 = vmatprep.subr.mxu0 0.0
        %630 = vmatpush1.msra.mxu0 %v575
        %631 = vmatprep.subr.mxu0 0.0
        %632 = vmatpush1.msra.mxu0 %v576
        %633 = vmatprep.subr.mxu0 0.0
        %634 = vmatpush1.msra.mxu0 %v577
        %635 = vmatprep.subr.mxu0 0.0
        %636 = vmatpush1.msra.mxu0 %v578
        %637 = vmatprep.subr.mxu0 0.0
        %638 = vmatpush1.msra.mxu0 %v579
        %639 = vmatprep.subr.mxu0 0.0
        %640 = vmatpush1.msra.mxu0 %v580
        %641 = vmatprep.subr.mxu0 0.0
        %642 = vmatpush1.msra.mxu0 %v581
        %643 = vmatprep.subr.mxu0 0.0
        %644 = vmatpush1.msra.mxu0 %v582
        %645 = vmatprep.subr.mxu0 0.0
        %646 = vmatpush1.msra.mxu0 %v583
        %647 = vmatprep.subr.mxu0 0.0
        %648 = vmatpush1.msra.mxu0 %v584
        %649 = vmatprep.mubr.f32.mxu0 %v545
        %650 = vmatmul.mubr.f32.gmra.mrb[0].mxu0 %v544
        %v651 = vpop.f32.mrb[0].mxu0
        %v652 = vadd.f32 0.0, %v651
        %v653 = vpop.f32.mrb[0].mxu0
        %654 = vmatprep.mubr.f32.mxu0 %v547
        %655 = vmatmul.mubr.f32.gmra.mrb[0].mxu0 %v546
        %v656 = vpop.f32.mrb[0].mxu0
        %v657 = vadd.f32 0.0, %v656
        %v658 = vpop.f32.mrb[0].mxu0
        %659 = vmatprep.mubr.f32.mxu0 %v549
        %660 = vmatmul.mubr.f32.gmra.mrb[0].mxu0 %v548
        %v661 = vpop.f32.mrb[0].mxu0
        %v662 = vadd.f32 0.0, %v661
        %v663 = vpop.f32.mrb[0].mxu0
        %664 = vdwg.mxu0
        %v665 = vadd.f32 %v550, %v652
        %v666 = vadd.f32 %v551, %v657
        %v667 = vadd.f32 %v552, %v662
        %668 = vst [vmem:[#allocation2] sm:$0xff] %v665
        %669 = vst [vmem:[#allocation2 + $0x8] sm:$0xff] %v666
        %670 = vst [vmem:[#allocation2 + $0x10] sm:$0xff] %v667
        %p671 = scmp.eq.s32.totalorder %s25, 1
        // Predicated region
        $region45: #{_mlp_forward.1} parent=31 // pred_check
          %p672 = pneg %p671
        $region46: #{_mlp_forward.1} parent=31 // pred_check_branch
          %674 = sbr.rel (%p672) target = $region48
        $region47: #{_mlp_forward.1} parent=31 // pred_region
          %v675 = vld [vmem:[#allocation2] sm:$0xff]
          %v676 = vld [vmem:[#allocation2 + $0x8] sm:$0xff]
          %v677 = vld [vmem:[#allocation2 + $0x10] sm:$0xff]
          %678 = vst [vmem:[%s266] sm:$0xff] %v675
          %679 = vst [vmem:[%s266 + $0x8] sm:$0xff] %v676
          %680 = vst [vmem:[%s266 + $0x10] sm:$0xff] %v677
        $region48: #{_mlp_forward.1} parent=31 // pred_fallthru
          _
        %s681 = smul.u32 3, %s24
        %p682 = scmp.lt.s32.totalorder %s681, 2
        %s683 = scalar_select %p682, %s681, 2
        %s684 = smul.addr %s683, 8
        %s685 = scalar_lea.vmem %s3, %s684
        // Predicated region
        $region49: #{_mlp_forward.1} parent=31 // pred_check
          %p686 = pneg %p128
        $region50: #{_mlp_forward.1} parent=31 // pred_check_branch
          %688 = sbr.rel (%p686) target = $region52
        $region51: #{_mlp_forward.1} parent=31 // pred_region
          %s689 = smul.u32 3, %s24
        $region52: #{_mlp_forward.1} parent=31 // pred_fallthru
          _
        // Predicated region
        $region53: #{_mlp_forward.1} parent=31 // pred_check
          %p690 = pneg %p128
        $region54: #{_mlp_forward.1} parent=31 // pred_check_branch
          %692 = sbr.rel (%p690) target = $region56
        $region55: #{_mlp_forward.1} parent=31 // pred_region
          %s693 = smul.u32 3, %s24
          %p694 = scmp.lt.s32.totalorder %s693, 2
          %s695 = scalar_select %p694, %s693, 2
          %s696 = smul.addr %s695, 8
          %s697 = scalar_lea.vmem %s3, %s696
        $region56: #{_mlp_forward.1} parent=31 // pred_fallthru
          _
      $region32: #{_mlp_forward.1} parent=5 // pred_fallthru
        _
      %p698 = scmp.le.s32.totalorder 2, %s15
      // Predicated region
      $region57: #{_mlp_forward.1} parent=5 // pred_check
        %p699 = pneg %p698
      $region58: #{_mlp_forward.1} parent=5 // pred_check_branch
        %701 = sbr.rel (%p699) target = $region60
      $region59: #{_mlp_forward.1} parent=5 // pred_region
        %s702 = ssub.s32 %s15, 2
      $region60: #{_mlp_forward.1} parent=5 // pred_fallthru
        _
    $region6: #{_mlp_forward.1} parent=1 // loop_footer
      %s19 = sadd.s32 1, %s15
    $region7: #{_mlp_forward.1} parent=1 // loop_footer_branch
      %14 = sbr.rel target = $region3
    $region8: #{_mlp_forward.1} parent=1 // loop_exit
      _
    %703 = vsyncpa [#allocation4], 1
    %s704 = scalar_lea.sflag [#allocation4], 1
    %705 = vsyncpa %s704, 1
    %706 = vsyncpa [#allocation6], 1
    %s707 = scalar_lea.sflag [#allocation6], 1
    %708 = vsyncpa %s707, 1

</llo_original>
